<compile_context>
chip_gen: v7x
topology: tpu7x:2x2x1
jax: 0.10.0
libtpu: 0.0.40
codegen_flags: <defaults>
</compile_context>

<pallas_src>
import functools

import jax
import jax.numpy as jnp
from jax import lax
from jax.experimental import pallas as pl
from jax.experimental.pallas import tpu as pltpu


def _round_up(x, m):
    return (x + m - 1) // m * m


# ---------------------------------------------------------------------------
# Kernels
# ---------------------------------------------------------------------------
def _embed_ln_pos_kernel(ids_ref, pos_ref,            # SMEM (Npad,) int32 (prefetch)
                         wtab_ref, ptab_ref,           # HBM (pl.ANY) tables
                         gamma_ref, beta_ref,          # (1, D) LayerNorm params
                         out_ref,                      # (T, D) output tile
                         wbuf, pbuf, sem,              # VMEM scratch + DMA sems
                         *, eps):
    T, D = out_ref.shape
    E = wbuf.shape[1]
    base = pl.program_id(0) * T

    # Row-gather this tile's word / position embeddings from HBM.  All 2*T
    # small DMAs are issued before any wait so they overlap each other.
    @pl.loop(0, T)
    def _(t):
        wid = ids_ref[base + t]
        pid = pos_ref[base + t]
        pltpu.make_async_copy(wtab_ref.at[pl.ds(wid, 1), :],
                              wbuf.at[pl.ds(t, 1), :], sem.at[0]).start()
        pltpu.make_async_copy(ptab_ref.at[pl.ds(pid, 1), :],
                              pbuf.at[pl.ds(t, 1), :], sem.at[1]).start()

    @pl.loop(0, T)
    def _(t):
        pltpu.make_async_copy(wtab_ref.at[pl.ds(0, 1), :],
                              wbuf.at[pl.ds(t, 1), :], sem.at[0]).wait()
        pltpu.make_async_copy(ptab_ref.at[pl.ds(0, 1), :],
                              pbuf.at[pl.ds(t, 1), :], sem.at[1]).wait()

    w = wbuf[...]                                       # (T, E)     f32
    p = pbuf[...]                                       # (T, D - E) f32

    # LayerNorm over the concatenated feature axis WITHOUT materializing the
    # concat: partial sums of the two slices.
    inv_d = 1.0 / D
    mean = (jnp.sum(w, axis=-1, keepdims=True)
            + jnp.sum(p, axis=-1, keepdims=True)) * inv_d
    wc = w - mean
    pc = p - mean
    var = (jnp.sum(wc * wc, axis=-1, keepdims=True)
           + jnp.sum(pc * pc, axis=-1, keepdims=True)) * inv_d
    inv = lax.rsqrt(var + eps)

    out_ref[:, :E] = wc * inv * gamma_ref[:, :E] + beta_ref[:, :E]
    out_ref[:, E:] = pc * inv * gamma_ref[:, E:] + beta_ref[:, E:]


def _embed_ln_nopos_kernel(ids_ref,                    # SMEM (Npad,) int32 (prefetch)
                           wtab_ref,                    # HBM (pl.ANY) word table
                           gamma_ref, beta_ref,         # (1, E) LayerNorm params
                           out_ref,                      # (T, E) output tile
                           wbuf, sem,                   # VMEM scratch + DMA sem
                           *, eps):
    T, E = out_ref.shape
    base = pl.program_id(0) * T

    @pl.loop(0, T)
    def _(t):
        wid = ids_ref[base + t]
        pltpu.make_async_copy(wtab_ref.at[pl.ds(wid, 1), :],
                              wbuf.at[pl.ds(t, 1), :], sem.at[0]).start()

    @pl.loop(0, T)
    def _(t):
        pltpu.make_async_copy(wtab_ref.at[pl.ds(0, 1), :],
                              wbuf.at[pl.ds(t, 1), :], sem.at[0]).wait()

    x = wbuf[...]                                       # (T, E) f32
    inv_d = 1.0 / E
    mean = jnp.sum(x, axis=-1, keepdims=True) * inv_d
    xc = x - mean
    var = jnp.sum(xc * xc, axis=-1, keepdims=True) * inv_d
    inv = lax.rsqrt(var + eps)
    out_ref[...] = xc * inv * gamma_ref[...] + beta_ref[...]


# ---------------------------------------------------------------------------
# Wrapper (the "module")
# ---------------------------------------------------------------------------
class GloveEmbeddingsPallas:
    def __init__(self, key, *, vocab_size, emb_dim, max_position_embeddings,
                 position_emb_size, bert_input_size, layer_norm_eps=1e-12):
        k0, k1 = jax.random.split(key, 2)
        self.emb_dim_words = emb_dim
        self.pos_dim = position_emb_size
        self.emb_dim = emb_dim + position_emb_size
        self.eps = float(layer_norm_eps)

        # word embeddings ~ gen_embeddings: N(0, 0.01)   (emb_file load is I/O
        # and cannot be replicated in-kernel; random init stands in for it)
        self.word_table = (0.01 * jax.random.normal(
            k0, (vocab_size, emb_dim))).astype(jnp.float32)
        # position embeddings ~ default nn.Embedding init N(0, 1)
        self.pos_table = jax.random.normal(
            k1, (max_position_embeddings, position_emb_size)).astype(jnp.float32)

        # LayerNorm params (gamma=1, beta=0, deterministic)
        self.ln_gamma = jnp.ones((1, self.emb_dim), jnp.float32)
        self.ln_beta = jnp.zeros((1, self.emb_dim), jnp.float32)
        self.ln_np_gamma = jnp.ones((1, bert_input_size), jnp.float32)
        self.ln_np_beta = jnp.zeros((1, bert_input_size), jnp.float32)

    @staticmethod
    def _block_size(n):
        # Multiple of 8; give the grid >=2 steps when possible (so the
        # "parallel" token axis can use both TCs on dual-TC parts); cap the
        # tile at 512 rows (per-step cost is dominated by the 2*T row DMAs,
        # so larger tiles add little and only grow outstanding-DMA count).
        if n <= 8:
            return 8
        return min(512, _round_up(-(-n // 2), 8))

    # ---------------- forward ----------------
    def __call__(self, input_ids, position_ids=None):
        B, S = input_ids.shape
        N = B * S
        T = self._block_size(N)
        Npad = _round_up(N, T)
        grid = (Npad // T,)

        V, E = self.word_table.shape

        # Clip ids to the valid range (padding rows use id 0).  NOTE: this is
        # a semantic difference from nn.Embedding, which would raise on OOB.
        ids = jnp.clip(input_ids.reshape(N).astype(jnp.int32), 0, V - 1)
        ids = jnp.pad(ids, (0, Npad - N))

        if position_ids is not None:
            P, PD = self.pos_table.shape
            D = self.emb_dim
            pos = jnp.clip(position_ids.reshape(N).astype(jnp.int32), 0, P - 1)
            pos = jnp.pad(pos, (0, Npad - N))

            kernel = functools.partial(_embed_ln_pos_kernel, eps=self.eps)
            grid_spec = pltpu.PrefetchScalarGridSpec(
                num_scalar_prefetch=2,
                grid=grid,
                in_specs=[
                    pl.BlockSpec(memory_space=pl.ANY),                  # word table (HBM)
                    pl.BlockSpec(memory_space=pl.ANY),                  # pos table (HBM)
                    pl.BlockSpec((1, D), lambda i, ids, pos: (0, 0)),   # gamma
                    pl.BlockSpec((1, D), lambda i, ids, pos: (0, 0)),   # beta
                ],
                out_specs=pl.BlockSpec((T, D), lambda i, ids, pos: (i, 0)),
                scratch_shapes=[
                    pltpu.VMEM((T, E), jnp.float32),
                    pltpu.VMEM((T, PD), jnp.float32),
                    pltpu.SemaphoreType.DMA((2,)),
                ],
            )
            vmem_need = 4 * (2 * T * D + T * E + T * PD + 4 * D) + (2 << 20)
            cost = pl.CostEstimate(
                flops=int(10 * Npad * D),
                transcendentals=int(Npad),
                bytes_accessed=int(4 * (2 * Npad + Npad * (E + PD)
                                        + Npad * D + 2 * D)),
            )
            out = pl.pallas_call(
                kernel,
                grid_spec=grid_spec,
                out_shape=jax.ShapeDtypeStruct((Npad, D), jnp.float32),
                compiler_params=pltpu.CompilerParams(
                    dimension_semantics=("parallel",),
                    vmem_limit_bytes=int(max(vmem_need, 32 << 20))),
                cost_estimate=cost,
            )(ids, pos, self.word_table, self.pos_table,
              self.ln_gamma, self.ln_beta)
            return out[:N].reshape(B, S, D), self.emb_dim

        # no-position branch: LayerNorm_no_position over bert_input_size
        D = self.ln_np_gamma.shape[-1]
        assert D == self.emb_dim_words, (
            "no-position branch requires bert_input_size == emb_dim "
            "(same constraint as the PyTorch module at runtime)")
        kernel = functools.partial(_embed_ln_nopos_kernel, eps=self.eps)
        grid_spec = pltpu.PrefetchScalarGridSpec(
            num_scalar_prefetch=1,
            grid=grid,
            in_specs=[
                pl.BlockSpec(memory_space=pl.ANY),              # word table (HBM)
                pl.BlockSpec((1, D), lambda i, ids: (0, 0)),    # gamma
                pl.BlockSpec((1, D), lambda i, ids: (0, 0)),    # beta
            ],
            out_specs=pl.BlockSpec((T, D), lambda i, ids: (i, 0)),
            scratch_shapes=[
                pltpu.VMEM((T, E), jnp.float32),
                pltpu.SemaphoreType.DMA((1,)),
            ],
        )
        vmem_need = 4 * (2 * T * D + T * E + 4 * D) + (2 << 20)
        cost = pl.CostEstimate(
            flops=int(10 * Npad * D),
            transcendentals=int(Npad),
            bytes_accessed=int(4 * (Npad + Npad * E + Npad * D + 2 * D)),
        )
        out = pl.pallas_call(
            kernel,
            grid_spec=grid_spec,
            out_shape=jax.ShapeDtypeStruct((Npad, D), jnp.float32),
            compiler_params=pltpu.CompilerParams(
                dimension_semantics=("parallel",),
                vmem_limit_bytes=int(max(vmem_need, 32 << 20))),
            cost_estimate=cost,
        )(ids, self.word_table, self.ln_np_gamma, self.ln_np_beta)
        return out[:N].reshape(B, S, D), self.emb_dim


# ---------------------------------------------------------------------------
# Pure-JAX reference (for correctness check)
# ---------------------------------------------------------------------------
def _reference(mod, input_ids, position_ids=None):
    w = jnp.take(mod.word_table, input_ids, axis=0)
    if position_ids is not None:
        p = jnp.take(mod.pos_table, position_ids, axis=0)
        x = jnp.concatenate([w, p], axis=-1)
        g, b = mod.ln_gamma[0], mod.ln_beta[0]
    else:
        x = w
        g, b = mod.ln_np_gamma[0], mod.ln_np_beta[0]
    mean = jnp.mean(x, axis=-1, keepdims=True)
    var = jnp.mean((x - mean) ** 2, axis=-1, keepdims=True)
    return (x - mean) * lax.rsqrt(var + mod.eps) * g + b


if __name__ == "__main__":
    key = jax.random.PRNGKey(0)
    kp, kid = jax.random.split(key)

    # small synthetic config
    VOCAB, EMB, POS_EMB, MAX_POS, BERT_IN = 64, 32, 16, 8, 32
    B, S = 2, 8

    mod = GloveEmbeddingsPallas(
        kp, vocab_size=VOCAB, emb_dim=EMB,
        max_position_embeddings=MAX_POS, position_emb_size=POS_EMB,
        bert_input_size=BERT_IN, layer_norm_eps=1e-12)

    input_ids = jax.random.randint(kid, (B, S), 0, VOCAB, dtype=jnp.int32)
    position_ids = jnp.broadcast_to(jnp.arange(S, dtype=jnp.int32), (B, S))

    # The gather is now an exact DMA row copy; only LayerNorm rounding remains.
    TOL = 1e-5

    # with position embeddings
    out_pos, dim_pos = mod(input_ids, position_ids)
    out_pos = jax.block_until_ready(out_pos)
    ref_pos = _reference(mod, input_ids, position_ids)
    assert out_pos.shape == (B, S, EMB + POS_EMB) and dim_pos == EMB + POS_EMB
    assert jnp.allclose(out_pos, ref_pos, atol=TOL, rtol=TOL)

    # without position embeddings
    out_np, dim_np = mod(input_ids, None)
    out_np = jax.block_until_ready(out_np)
    ref_np = _reference(mod, input_ids, None)
    assert out_np.shape == (B, S, BERT_IN)
    assert jnp.allclose(out_np, ref_np, atol=TOL, rtol=TOL)

    # exercise the padding path (N not a multiple of 8)
    B2, S2 = 3, 5
    ids2 = jax.random.randint(jax.random.PRNGKey(7), (B2, S2), 0, VOCAB,
                              dtype=jnp.int32)
    pos2 = jnp.broadcast_to(jnp.arange(S2, dtype=jnp.int32), (B2, S2))
    out2, _ = mod(ids2, pos2)
    out2 = jax.block_until_ready(out2)
    ref2 = _reference(mod, ids2, pos2)
    assert out2.shape == (B2, S2, EMB + POS_EMB)
    assert jnp.allclose(out2, ref2, atol=TOL, rtol=TOL)

    print("KERNEL_OK")
</pallas_src>

<mosaic_0001>
module attributes {stable_mosaic.version = 11 : i64} {
  func.func @_embed_ln_pos_kernel(%arg0: i32, %arg1: memref<16xi32, #tpu.memory_space<smem>>, %arg2: memref<16xi32, #tpu.memory_space<smem>>, %arg3: memref<64x32xf32, #tpu.memory_space<any>>, %arg4: memref<8x16xf32, #tpu.memory_space<any>>, %arg5: memref<1x48xf32, #tpu.memory_space<vmem>>, %arg6: memref<1x48xf32, #tpu.memory_space<vmem>>, %arg7: memref<8x48xf32, #tpu.memory_space<vmem>>, %arg8: memref<8x32xf32, #tpu.memory_space<vmem>>, %arg9: memref<8x16xf32, #tpu.memory_space<vmem>>, %arg10: memref<2x!tpu.dma_semaphore, #tpu.memory_space<semaphore_mem>>) attributes {dimension_semantics = [#tpu.dimension_semantics<parallel>], iteration_bounds = array<i64: 2>, scalar_prefetch = 2 : i64, scratch_operands = 3 : i64, tpu.core_type = #tpu.core_type<tc>, window_params = [{}, {}, {pipeline_mode = #tpu.pipeline_mode<synchronous>, transform_indices = @transform_2, window_bounds = array<i64: 1, 48>}, {pipeline_mode = #tpu.pipeline_mode<synchronous>, transform_indices = @transform_3, window_bounds = array<i64: 1, 48>}, {transform_indices = @transform_4, window_bounds = array<i64: 8, 48>}]} {
    %c8_i32 = arith.constant 8 : i32
    %0 = arith.muli %arg0, %c8_i32 : i32
    %c0_i32 = arith.constant 0 : i32
    %c8_i32_0 = arith.constant 8 : i32
    %1 = arith.addi %c0_i32, %c8_i32_0 : i32
    %c1_i32 = arith.constant 1 : i32
    scf.for %arg11 = %c0_i32 to %1 step %c1_i32  : i32 {
      %c1_i32_26 = arith.constant 1 : i32
      %46 = arith.muli %arg11, %c1_i32_26 : i32
      %c0_i32_27 = arith.constant 0 : i32
      %47 = arith.addi %c0_i32_27, %46 : i32
      %48 = arith.addi %0, %47 : i32
      %49 = arith.index_cast %48 : i32 to index
      %50 = memref.load %arg1[%49] : memref<16xi32, #tpu.memory_space<smem>>
      %51 = arith.addi %0, %47 : i32
      %52 = arith.index_cast %51 : i32 to index
      %53 = memref.load %arg2[%52] : memref<16xi32, #tpu.memory_space<smem>>
      %c0_i32_28 = arith.constant 0 : i32
      %c0_i32_29 = arith.constant 0 : i32
      %54 = tpu.memref_slice %arg3[%50, %c0_i32_29] : memref<64x32xf32, #tpu.memory_space<any>> -> memref<1x32xf32, #tpu.memory_space<any>>
      %c0_i32_30 = arith.constant 0 : i32
      %55 = tpu.memref_slice %arg8[%47, %c0_i32_30] : memref<8x32xf32, #tpu.memory_space<vmem>> -> memref<1x32xf32, #tpu.memory_space<vmem>>
      %56 = tpu.memref_slice %arg10[%c0_i32_28] : memref<2x!tpu.dma_semaphore, #tpu.memory_space<semaphore_mem>> -> memref<1x!tpu.dma_semaphore, #tpu.memory_space<semaphore_mem>>
      %57 = tpu.memref_squeeze %56 : memref<1x!tpu.dma_semaphore, #tpu.memory_space<semaphore_mem>> -> memref<!tpu.dma_semaphore, #tpu.memory_space<semaphore_mem>>
      tpu.enqueue_dma source(%54 : memref<1x32xf32, #tpu.memory_space<any>>) target(%55 : memref<1x32xf32, #tpu.memory_space<vmem>>) target_semaphore(%57 : memref<!tpu.dma_semaphore, #tpu.memory_space<semaphore_mem>>)
      %c1_i32_31 = arith.constant 1 : i32
      %c0_i32_32 = arith.constant 0 : i32
      %58 = tpu.memref_slice %arg4[%53, %c0_i32_32] : memref<8x16xf32, #tpu.memory_space<any>> -> memref<1x16xf32, #tpu.memory_space<any>>
      %c0_i32_33 = arith.constant 0 : i32
      %59 = tpu.memref_slice %arg9[%47, %c0_i32_33] : memref<8x16xf32, #tpu.memory_space<vmem>> -> memref<1x16xf32, #tpu.memory_space<vmem>>
      %60 = tpu.memref_slice %arg10[%c1_i32_31] : memref<2x!tpu.dma_semaphore, #tpu.memory_space<semaphore_mem>> -> memref<1x!tpu.dma_semaphore, #tpu.memory_space<semaphore_mem>>
      %61 = tpu.memref_squeeze %60 : memref<1x!tpu.dma_semaphore, #tpu.memory_space<semaphore_mem>> -> memref<!tpu.dma_semaphore, #tpu.memory_space<semaphore_mem>>
      tpu.enqueue_dma source(%58 : memref<1x16xf32, #tpu.memory_space<any>>) target(%59 : memref<1x16xf32, #tpu.memory_space<vmem>>) target_semaphore(%61 : memref<!tpu.dma_semaphore, #tpu.memory_space<semaphore_mem>>)
    }
    %c8_i32_1 = arith.constant 8 : i32
    %c0_i32_2 = arith.constant 0 : i32
    %c8_i32_3 = arith.constant 8 : i32
    %2 = arith.addi %c0_i32_2, %c8_i32_3 : i32
    %c1_i32_4 = arith.constant 1 : i32
    scf.for %arg11 = %c0_i32_2 to %2 step %c1_i32_4  : i32 {
      %c1_i32_26 = arith.constant 1 : i32
      %46 = arith.muli %arg11, %c1_i32_26 : i32
      %c0_i32_27 = arith.constant 0 : i32
      %47 = arith.addi %c0_i32_27, %46 : i32
      %c0_i32_28 = arith.constant 0 : i32
      %c0_i32_29 = arith.constant 0 : i32
      %c0_i32_30 = arith.constant 0 : i32
      %48 = tpu.memref_slice %arg3[%c0_i32_29, %c0_i32_30] : memref<64x32xf32, #tpu.memory_space<any>> -> memref<1x32xf32, #tpu.memory_space<any>>
      %c0_i32_31 = arith.constant 0 : i32
      %49 = tpu.memref_slice %arg8[%47, %c0_i32_31] : memref<8x32xf32, #tpu.memory_space<vmem>> -> memref<1x32xf32, #tpu.memory_space<vmem>>
      %50 = tpu.memref_slice %arg10[%c0_i32_28] : memref<2x!tpu.dma_semaphore, #tpu.memory_space<semaphore_mem>> -> memref<1x!tpu.dma_semaphore, #tpu.memory_space<semaphore_mem>>
      %51 = tpu.memref_squeeze %50 : memref<1x!tpu.dma_semaphore, #tpu.memory_space<semaphore_mem>> -> memref<!tpu.dma_semaphore, #tpu.memory_space<semaphore_mem>>
      tpu.wait_dma2 semaphore(%51 : memref<!tpu.dma_semaphore, #tpu.memory_space<semaphore_mem>>) src(%48 : memref<1x32xf32, #tpu.memory_space<any>>) dst(%49 : memref<1x32xf32, #tpu.memory_space<vmem>>)
      %c1_i32_32 = arith.constant 1 : i32
      %c0_i32_33 = arith.constant 0 : i32
      %c0_i32_34 = arith.constant 0 : i32
      %52 = tpu.memref_slice %arg4[%c0_i32_33, %c0_i32_34] : memref<8x16xf32, #tpu.memory_space<any>> -> memref<1x16xf32, #tpu.memory_space<any>>
      %c0_i32_35 = arith.constant 0 : i32
      %53 = tpu.memref_slice %arg9[%47, %c0_i32_35] : memref<8x16xf32, #tpu.memory_space<vmem>> -> memref<1x16xf32, #tpu.memory_space<vmem>>
      %54 = tpu.memref_slice %arg10[%c1_i32_32] : memref<2x!tpu.dma_semaphore, #tpu.memory_space<semaphore_mem>> -> memref<1x!tpu.dma_semaphore, #tpu.memory_space<semaphore_mem>>
      %55 = tpu.memref_squeeze %54 : memref<1x!tpu.dma_semaphore, #tpu.memory_space<semaphore_mem>> -> memref<!tpu.dma_semaphore, #tpu.memory_space<semaphore_mem>>
      tpu.wait_dma2 semaphore(%55 : memref<!tpu.dma_semaphore, #tpu.memory_space<semaphore_mem>>) src(%52 : memref<1x16xf32, #tpu.memory_space<any>>) dst(%53 : memref<1x16xf32, #tpu.memory_space<vmem>>)
    }
    %c8_i32_5 = arith.constant 8 : i32
    %c0 = arith.constant 0 : index
    %c0_6 = arith.constant 0 : index
    %3 = vector.load %arg8[%c0, %c0_6] : memref<8x32xf32, #tpu.memory_space<vmem>>, vector<8x32xf32>
    %c0_7 = arith.constant 0 : index
    %c0_8 = arith.constant 0 : index
    %4 = vector.load %arg9[%c0_7, %c0_8] : memref<8x16xf32, #tpu.memory_space<vmem>>, vector<8x16xf32>
    %cst = arith.constant dense<0.000000e+00> : vector<8xf32>
    %5 = vector.multi_reduction <add>, %3, %cst [1] : vector<8x32xf32> to vector<8xf32>
    %6 = vector.shape_cast %5 : vector<8xf32> to vector<8x1xf32>
    %cst_9 = arith.constant dense<0.000000e+00> : vector<8xf32>
    %7 = vector.multi_reduction <add>, %4, %cst_9 [1] : vector<8x16xf32> to vector<8xf32>
    %8 = vector.shape_cast %7 : vector<8xf32> to vector<8x1xf32>
    %9 = arith.addf %6, %8 : vector<8x1xf32>
    %cst_10 = arith.constant 0.020833334 : f32
    %10 = vector.broadcast %cst_10 : f32 to vector<8x1xf32>
    %11 = arith.mulf %9, %10 : vector<8x1xf32>
    %12 = vector.broadcast %11 : vector<8x1xf32> to vector<8x32xf32>
    %13 = arith.subf %3, %12 : vector<8x32xf32>
    %14 = vector.broadcast %11 : vector<8x1xf32> to vector<8x16xf32>
    %15 = arith.subf %4, %14 : vector<8x16xf32>
    %16 = arith.mulf %13, %13 : vector<8x32xf32>
    %cst_11 = arith.constant dense<0.000000e+00> : vector<8xf32>
    %17 = vector.multi_reduction <add>, %16, %cst_11 [1] : vector<8x32xf32> to vector<8xf32>
    %18 = vector.shape_cast %17 : vector<8xf32> to vector<8x1xf32>
    %19 = arith.mulf %15, %15 : vector<8x16xf32>
    %cst_12 = arith.constant dense<0.000000e+00> : vector<8xf32>
    %20 = vector.multi_reduction <add>, %19, %cst_12 [1] : vector<8x16xf32> to vector<8xf32>
    %21 = vector.shape_cast %20 : vector<8xf32> to vector<8x1xf32>
    %22 = arith.addf %18, %21 : vector<8x1xf32>
    %cst_13 = arith.constant 0.020833334 : f32
    %23 = vector.broadcast %cst_13 : f32 to vector<8x1xf32>
    %24 = arith.mulf %22, %23 : vector<8x1xf32>
    %cst_14 = arith.constant 9.99999996E-13 : f32
    %25 = vector.broadcast %cst_14 : f32 to vector<8x1xf32>
    %26 = arith.addf %24, %25 : vector<8x1xf32>
    %27 = math.rsqrt %26 : vector<8x1xf32>
    %28 = vector.broadcast %27 : vector<8x1xf32> to vector<8x32xf32>
    %29 = arith.mulf %13, %28 : vector<8x32xf32>
    %c0_15 = arith.constant 0 : index
    %c0_16 = arith.constant 0 : index
    %30 = vector.load %arg5[%c0_15, %c0_16] : memref<1x48xf32, #tpu.memory_space<vmem>>, vector<1x32xf32>
    %31 = vector.broadcast %30 : vector<1x32xf32> to vector<8x32xf32>
    %32 = arith.mulf %29, %31 : vector<8x32xf32>
    %c0_17 = arith.constant 0 : index
    %c0_18 = arith.constant 0 : index
    %33 = vector.load %arg6[%c0_17, %c0_18] : memref<1x48xf32, #tpu.memory_space<vmem>>, vector<1x32xf32>
    %34 = vector.broadcast %33 : vector<1x32xf32> to vector<8x32xf32>
    %35 = arith.addf %32, %34 : vector<8x32xf32>
    %c0_19 = arith.constant 0 : index
    %c0_20 = arith.constant 0 : index
    %36 = vector.load %arg7[%c0_19, %c0_20] : memref<8x48xf32, #tpu.memory_space<vmem>>, vector<8x32xf32>
    tpu.vector_store %arg7[%c0_19, %c0_20], %35 {strides = array<i32>} : memref<8x48xf32, #tpu.memory_space<vmem>>, vector<8x32xf32>,
    %37 = vector.broadcast %27 : vector<8x1xf32> to vector<8x16xf32>
    %38 = arith.mulf %15, %37 : vector<8x16xf32>
    %c0_21 = arith.constant 0 : index
    %c32 = arith.constant 32 : index
    %39 = vector.load %arg5[%c0_21, %c32] : memref<1x48xf32, #tpu.memory_space<vmem>>, vector<1x16xf32>
    %40 = vector.broadcast %39 : vector<1x16xf32> to vector<8x16xf32>
    %41 = arith.mulf %38, %40 : vector<8x16xf32>
    %c0_22 = arith.constant 0 : index
    %c32_23 = arith.constant 32 : index
    %42 = vector.load %arg6[%c0_22, %c32_23] : memref<1x48xf32, #tpu.memory_space<vmem>>, vector<1x16xf32>
    %43 = vector.broadcast %42 : vector<1x16xf32> to vector<8x16xf32>
    %44 = arith.addf %41, %43 : vector<8x16xf32>
    %c0_24 = arith.constant 0 : index
    %c32_25 = arith.constant 32 : index
    %45 = vector.load %arg7[%c0_24, %c32_25] : memref<8x48xf32, #tpu.memory_space<vmem>>, vector<8x16xf32>
    tpu.vector_store %arg7[%c0_24, %c32_25], %44 {strides = array<i32>} : memref<8x48xf32, #tpu.memory_space<vmem>>, vector<8x16xf32>,
    return
  }
  func.func @transform_2(%arg0: i32, %arg1: memref<16xi32, #tpu.memory_space<smem>>, %arg2: memref<16xi32, #tpu.memory_space<smem>>) -> (i32, i32) {
    %c0_i32 = arith.constant 0 : i32
    %c0_i32_0 = arith.constant 0 : i32
    %c0_i32_1 = arith.constant 0 : i32
    return %c0_i32, %c0_i32_0 : i32, i32
  }
  func.func @transform_3(%arg0: i32, %arg1: memref<16xi32, #tpu.memory_space<smem>>, %arg2: memref<16xi32, #tpu.memory_space<smem>>) -> (i32, i32) {
    %c0_i32 = arith.constant 0 : i32
    %c0_i32_0 = arith.constant 0 : i32
    %c0_i32_1 = arith.constant 0 : i32
    return %c0_i32, %c0_i32_0 : i32, i32
  }
  func.func @transform_4(%arg0: i32, %arg1: memref<16xi32, #tpu.memory_space<smem>>, %arg2: memref<16xi32, #tpu.memory_space<smem>>) -> (i32, i32) {
    %c0_i32 = arith.constant 0 : i32
    %c0_i32_0 = arith.constant 0 : i32
    return %arg0, %c0_i32 : i32, i32
  }
}

</mosaic_0001>

<llo_original>
// kernel: tpu_custom_call.1
$region0: #{tpu_custom_call.1}
  #allocation0 [shape = 'u32[]', space=smem, size = 0x4, offset = 0x4, fixed_abs, tag = 'smem constant byte address 0x4 - core index']
  #allocation1 [shape = 'u32[144,128]{1,0:T(1,128)}', space=vmem, size = 0x12000, scoped, tag = 'internal scratch']
  #allocation2 [shape = 'f32[8,32]{1,0:T(8,128)}', space=vmem, size = 0x1000, scoped, tag = 'scratch operand']
  #allocation3 [shape = 'f32[8,16]{1,0:T(8,128)}', space=vmem, size = 0x1000, scoped, tag = 'scratch operand']
  #allocation4 [shape = 's32[2]{0}', space=sflag, size = 0x8, scoped, tag = 'scratch operand']
  #allocation5 [shape = 's32[1]{0}', space=sflag, size = 0x4, scoped, tag = 'scoped memory for tpu_custom_call.1']
  #allocation6 [shape = 'u8[512]{0}', space=smem, size = 0x200, scoped, tag = 'prefetched SMEM operand 0']
  #allocation7 [shape = 'u8[512]{0}', space=smem, size = 0x200, scoped, tag = 'prefetched SMEM operand 1']
  #allocation10 [shape = 's32[]', space=sflag, size = 0x4, offset = 0, fixed_abs, tag = 'sflag constant byte address 0x0 - dummy sync flag']
  #allocation11 [shape = 's32[]', space=sflag, size = 0x4, offset = 0, fixed_abs, tag = 'sflag constant byte address 0x0 - dummy sync flag']
  %s0 = inlined_call_operand.vmem [shape: s32[16], index: 0, kind: input, shape index: {}]
  %s1 = inlined_call_operand.vmem [shape: s32[16], index: 1, kind: input, shape index: {}]
  %s2 = inlined_call_operand.vmem [shape: f32[64,32], index: 2, kind: input, shape index: {}]
  %s3 = inlined_call_operand.vmem [shape: f32[8,16], index: 3, kind: input, shape index: {}]
  %s4 = inlined_call_operand.vmem [shape: f32[1,48], index: 4, kind: input, shape index: {}]
  %s5 = inlined_call_operand.vmem [shape: f32[1,48], index: 5, kind: input, shape index: {}]
  %s6 = inlined_call_operand.hbm [shape: f32[16,48], index: 6, kind: output, shape index: {}]
  %s7 = sld [smem:[#allocation0]]
  $region115: #{tpu_custom_call.1} parent=0
    _
  %s9 = ssub.s32 1, %s7
  %s10 = scalar_select 0, %s9, %s7
  %s11 = sshll.u32 %s0, 4
  %s12 = int_to_ptr.vmem [resolvable:$true] %s11
  %14 = dma.vmem_to_smem %s12, 16, [#allocation6], [#allocation5]
  %s15 = sshll.u32 %s1, 4
  %s16 = int_to_ptr.vmem [resolvable:$true] %s15
  %18 = dma.vmem_to_smem %s16, 16, [#allocation7], [#allocation5]
  %19 = dma.done [#allocation5], 32
  %20 = sfence
  $region1: #{tpu_custom_call.1} parent=0
    #allocation8 [shape = 'u8[8192]{0}', space=vmem, size = 0x2000, scoped, tag = 'output window, operand 0']
    #allocation9 [shape = 's32[2]{0}', space=sflag, size = 0x8, scoped, tag = 'scoped memory for tpu_custom_call.1']
    %21 = vsyncpa [#allocation9], 0
    %s22 = scalar_lea.sflag [#allocation9], 1
    %23 = vsyncpa %s22, 0
    loop: start=0, step=1, limit=4
    $region2: #{tpu_custom_call.1} parent=1 // loop_pre_header
      _
    $region3: #{tpu_custom_call.1} parent=1 // loop_header
      %s25 = sphi 0, %s29
      %p26 = scmp.ge.s32.totalorder %s25, 4
      %s33 = sphi 0, %s33
      %s35 = sphi 0, %s33
      %s36 = sphi 0, %s35
      %s50 = sphi 0, %s36
      %s54 = sphi 0, %s54
      %s56 = sphi 0, %s54
      %s57 = sphi 0, %s56
      %s71 = sphi 0, %s57
      %s77 = sphi 0, %s79
      %s80 = sphi 0, %s77
      %s81 = sphi 0, %s80
      %s97 = sphi 0, %s81
    $region4: #{tpu_custom_call.1} parent=1 // loop_header_branch
      %28 = sbr.rel (%p26) target = $region8
    $region5: #{tpu_custom_call.1} parent=1 // loop_body
      %s30 = ssub.s32 %s25, 1
      %s31 = ssub.s32 %s25, 2
      %s32 = sadd.s32 %s25, 1
      %s34 = sadd.s32 %s33, 1
      %p37 = scmp.eq.s32.totalorder %s25, 1
      %p38 = scmp.ne.s32.totalorder %s33, %s35
      %p39 = scmp.eq.s32.totalorder %s25, 0
      %p40 = por %p38, %p39
      %p41 = scmp.ne.s32.totalorder %s33, %s35
      %p42 = scmp.eq.s32.totalorder %s30, 1
      %p43 = por %p41, %p42
      %p44 = scmp.ne.s32.totalorder %s35, %s36
      %p45 = scmp.eq.s32.totalorder %s30, 0
      %p46 = por %p44, %p45
      %p47 = scmp.ne.s32.totalorder %s35, %s36
      %p48 = scmp.eq.s32.totalorder %s31, 1
      %p49 = por %p47, %p48
      %p51 = scmp.ne.s32.totalorder %s36, %s50
      %p52 = scmp.eq.s32.totalorder %s31, 0
      %p53 = por %p51, %p52
      %s55 = sadd.s32 %s54, 1
      %p58 = scmp.eq.s32.totalorder %s25, 1
      %p59 = scmp.ne.s32.totalorder %s54, %s56
      %p60 = scmp.eq.s32.totalorder %s25, 0
      %p61 = por %p59, %p60
      %p62 = scmp.ne.s32.totalorder %s54, %s56
      %p63 = scmp.eq.s32.totalorder %s30, 1
      %p64 = por %p62, %p63
      %p65 = scmp.ne.s32.totalorder %s56, %s57
      %p66 = scmp.eq.s32.totalorder %s30, 0
      %p67 = por %p65, %p66
      %p68 = scmp.ne.s32.totalorder %s56, %s57
      %p69 = scmp.eq.s32.totalorder %s31, 1
      %p70 = por %p68, %p69
      %p72 = scmp.ne.s32.totalorder %s57, %s71
      %p73 = scmp.eq.s32.totalorder %s31, 0
      %p74 = por %p72, %p73
      %s75 = ssub.s32 %s25, %s32
      %p76 = scmp.eq.s32.totalorder %s75, 0
      %s78 = sadd.s32 %s77, 1
      %s79 = scalar_select %p76, %s77, %s78
      %p82 = pneg %p76
      %p83 = scmp.eq.s32.totalorder %s25, 1
      %p84 = por %p82, %p83
      %p85 = scmp.ne.s32.totalorder %s77, %s80
      %p86 = scmp.eq.s32.totalorder %s25, 0
      %p87 = por %p85, %p86
      %p88 = scmp.ne.s32.totalorder %s77, %s80
      %p89 = scmp.eq.s32.totalorder %s30, 1
      %p90 = por %p88, %p89
      %p91 = scmp.ne.s32.totalorder %s80, %s81
      %p92 = scmp.eq.s32.totalorder %s30, 0
      %p93 = por %p91, %p92
      %p94 = scmp.ne.s32.totalorder %s80, %s81
      %p95 = scmp.eq.s32.totalorder %s31, 1
      %p96 = por %p94, %p95
      %p98 = scmp.ne.s32.totalorder %s81, %s97
      %p99 = scmp.eq.s32.totalorder %s31, 0
      %p100 = por %p98, %p99
      %p101 = scmp.le.s32.totalorder 1, %s25
      %p102 = scmp.lt.s32.totalorder %s25, 3
      %p103 = pnand %p101, %p102
      %p104 = pneg %p103
      // Predicated region
      $region9: #{tpu_custom_call.1} parent=5 // pred_check
        _
      $region10: #{tpu_custom_call.1} parent=5 // pred_check_branch
        %106 = sbr.rel (%p103) target = $region12
      $region11: #{tpu_custom_call.1} parent=5 // pred_region
        %s107 = ssub.s32 %s25, 1
        // Predicated region
        $region13: #{tpu_custom_call.1} parent=11 // pred_check
          %p108 = pneg %p46
        $region14: #{tpu_custom_call.1} parent=11 // pred_check_branch
          %110 = sbr.rel (%p108) target = $region16
        $region15: #{tpu_custom_call.1} parent=11 // pred_region
          _
        $region16: #{tpu_custom_call.1} parent=11 // pred_fallthru
          _
        // Predicated region
        $region17: #{tpu_custom_call.1} parent=11 // pred_check
          %p111 = pneg %p67
        $region18: #{tpu_custom_call.1} parent=11 // pred_check_branch
          %113 = sbr.rel (%p111) target = $region20
        $region19: #{tpu_custom_call.1} parent=11 // pred_region
          _
        $region20: #{tpu_custom_call.1} parent=11 // pred_fallthru
          _
      $region12: #{tpu_custom_call.1} parent=5 // pred_fallthru
        _
      %p114 = scmp.lt.s32.totalorder %s25, 2
      // Predicated region
      $region21: #{tpu_custom_call.1} parent=5 // pred_check
        %p115 = pneg %p114
      $region22: #{tpu_custom_call.1} parent=5 // pred_check_branch
        %117 = sbr.rel (%p115) target = $region24
      $region23: #{tpu_custom_call.1} parent=5 // pred_region
        _
      $region24: #{tpu_custom_call.1} parent=5 // pred_fallthru
        _
      %p118 = scmp.le.s32.totalorder 1, %s25
      %p119 = scmp.lt.s32.totalorder %s25, 3
      %p120 = pnand %p118, %p119
      %p121 = pneg %p120
      // Predicated region
      $region25: #{tpu_custom_call.1} parent=5 // pred_check
        _
      $region26: #{tpu_custom_call.1} parent=5 // pred_check_branch
        %123 = sbr.rel (%p120) target = $region28
      $region27: #{tpu_custom_call.1} parent=5 // pred_region
        %s124 = ssub.s32 %s25, 1
        %p125 = pneg %p46
        %p126 = pneg %p43
        %p127 = pneg %p67
        %p128 = pneg %p64
        %p129 = pneg %p93
        %p130 = pneg %p90
        %s131 = sand.u32 %s80, 1
        %s132 = scalar_lea.sflag [#allocation9], %s131
        %s133 = sand.u32 %s80, 1
        %s134 = smul.addr %s133, 8
        %s135 = scalar_lea.vmem [#allocation8], %s134
        %s136 = smul.u32 %s30, 8
        loop: start=0, step=1, limit=8
        $region29: #{tpu_custom_call.1} parent=27 // loop_pre_header
          _
        $region30: #{tpu_custom_call.1} parent=27 // loop_header
          %s138 = sphi 0, %s142
          %p139 = scmp.ge.s32.totalorder %s138, 8
        $region31: #{tpu_custom_call.1} parent=27 // loop_header_branch
          %141 = sbr.rel (%p139) target = $region35
        $region32: #{tpu_custom_call.1} parent=27 // loop_body
          %s143 = sadd.s32 %s136, %s138
          %s144 = sld [smem:[#allocation6 + %s143]]
          %s145 = sld [smem:[#allocation7 + %s143]]
          %s146 = scalar_lea.vmem %s2, %s144
          %s147 = scalar_lea.vmem [#allocation2], %s138
          %p149 = scmp.lt.u32.totalorder 1, 8
          %p150 = pneg %p149
          // Predicated region
          $region36: #{tpu_custom_call.1} parent=32 // pred_check
            _
          $region37: #{tpu_custom_call.1} parent=32 // pred_check_branch
            %152 = sbr.rel (%p149) target = $region39
          $region38: #{tpu_custom_call.1} parent=32 // pred_region
            %s167 = sand.u32 1, 7
            %p168 = scmp.eq.s32.totalorder %s167, 0
            %p169 = pneg %p168
            // Predicated region
            $region51: #{tpu_custom_call.1} parent=38 // pred_check
              _
            $region52: #{tpu_custom_call.1} parent=38 // pred_check_branch
              %171 = sbr.rel (%p168) target = $region54
            $region53: #{tpu_custom_call.1} parent=38 // pred_region
              %s172 = sand.u32 1, 7
              %s173 = ssub.s32 1, %s172
              %s174 = scalar_lea.vmem %s146, %s173
              %s175 = ssub.s32 1, %s172
              %s176 = scalar_lea.vmem %s147, %s175 [#allocation2]
              %s177 = sshllo.u32 0, %s172
              loop: start=0, step=1, limit=1
              $region55: #{tpu_custom_call.1} parent=53 // loop_pre_header
                _
              $region56: #{tpu_custom_call.1} parent=53 // loop_header
                %s179 = sphi 0, %s183
                %p180 = scmp.ge.s32.totalorder %s179, 1
                %s184 = sphi %s174, %s174
                %s185 = sphi %s176, %s176
              $region57: #{tpu_custom_call.1} parent=53 // loop_header_branch
                %182 = sbr.rel (%p180) target = $region61
              $region58: #{tpu_custom_call.1} parent=53 // loop_body
                %v186 = vld [vmem:[%s184] sm:%s177]
                %187 = vst [vmem:[%s185] sm:%s177] %v186
              $region59: #{tpu_custom_call.1} parent=53 // loop_footer
                %s183 = sadd.s32 1, %s179
              $region60: #{tpu_custom_call.1} parent=53 // loop_footer_branch
                %178 = sbr.rel target = $region56
              $region61: #{tpu_custom_call.1} parent=53 // loop_exit
                _
            $region54: #{tpu_custom_call.1} parent=38 // pred_fallthru
              _
          $region39: #{tpu_custom_call.1} parent=32 // pred_fallthru
            _
          // Predicated region
          $region40: #{tpu_custom_call.1} parent=32 // pred_check
            %p153 = pneg %p149
          $region41: #{tpu_custom_call.1} parent=32 // pred_check_branch
            %155 = sbr.rel (%p153) target = $region43
          $region42: #{tpu_custom_call.1} parent=32 // pred_region
            %s156 = sshllo.u32 0, 1
            loop: start=0, step=1, limit=1
            $region44: #{tpu_custom_call.1} parent=42 // loop_pre_header
              _
            $region45: #{tpu_custom_call.1} parent=42 // loop_header
              %s158 = sphi 0, %s162
              %p159 = scmp.ge.s32.totalorder %s158, 1
              %s163 = sphi %s146, %s146
              %s164 = sphi %s147, %s147
            $region46: #{tpu_custom_call.1} parent=42 // loop_header_branch
              %161 = sbr.rel (%p159) target = $region50
            $region47: #{tpu_custom_call.1} parent=42 // loop_body
              %v165 = vld [vmem:[%s163] sm:%s156]
              %166 = vst [vmem:[%s164] sm:%s156] %v165
            $region48: #{tpu_custom_call.1} parent=42 // loop_footer
              %s162 = sadd.s32 1, %s158
            $region49: #{tpu_custom_call.1} parent=42 // loop_footer_branch
              %157 = sbr.rel target = $region45
            $region50: #{tpu_custom_call.1} parent=42 // loop_exit
              _
          $region43: #{tpu_custom_call.1} parent=32 // pred_fallthru
            _
          // Predicated region
          $region62: #{tpu_custom_call.1} parent=32 // pred_check
            _
          $region63: #{tpu_custom_call.1} parent=32 // pred_check_branch
            %190 = sbr.rel (0) target = $region65
          $region64: #{tpu_custom_call.1} parent=32 // pred_region
            %191 = vsyncadd [#allocation4], 16
          $region65: #{tpu_custom_call.1} parent=32 // pred_fallthru
            _
          %s192 = scalar_lea.vmem %s3, %s145
          %s193 = scalar_lea.vmem [#allocation3], %s138
          %s194 = scalar_lea.sflag [#allocation4], 1
          %p196 = scmp.lt.u32.totalorder 1, 8
          %p197 = pneg %p196
          // Predicated region
          $region66: #{tpu_custom_call.1} parent=32 // pred_check
            _
          $region67: #{tpu_custom_call.1} parent=32 // pred_check_branch
            %199 = sbr.rel (%p196) target = $region69
          $region68: #{tpu_custom_call.1} parent=32 // pred_region
            %s214 = sand.u32 1, 7
            %p215 = scmp.eq.s32.totalorder %s214, 0
            %p216 = pneg %p215
            // Predicated region
            $region81: #{tpu_custom_call.1} parent=68 // pred_check
              _
            $region82: #{tpu_custom_call.1} parent=68 // pred_check_branch
              %218 = sbr.rel (%p215) target = $region84
            $region83: #{tpu_custom_call.1} parent=68 // pred_region
              %s219 = sand.u32 1, 7
              %s220 = ssub.s32 1, %s219
              %s221 = scalar_lea.vmem %s192, %s220
              %s222 = ssub.s32 1, %s219
              %s223 = scalar_lea.vmem %s193, %s222 [#allocation3]
              %s224 = sshllo.u32 0, %s219
              loop: start=0, step=1, limit=1
              $region85: #{tpu_custom_call.1} parent=83 // loop_pre_header
                _
              $region86: #{tpu_custom_call.1} parent=83 // loop_header
                %s226 = sphi 0, %s230
                %p227 = scmp.ge.s32.totalorder %s226, 1
                %s231 = sphi %s221, %s221
                %s232 = sphi %s223, %s223
              $region87: #{tpu_custom_call.1} parent=83 // loop_header_branch
                %229 = sbr.rel (%p227) target = $region91
              $region88: #{tpu_custom_call.1} parent=83 // loop_body
                %v233 = vld [vmem:[%s231] sm:%s224]
                %234 = vst [vmem:[%s232] sm:%s224] %v233
              $region89: #{tpu_custom_call.1} parent=83 // loop_footer
                %s230 = sadd.s32 1, %s226
              $region90: #{tpu_custom_call.1} parent=83 // loop_footer_branch
                %225 = sbr.rel target = $region86
              $region91: #{tpu_custom_call.1} parent=83 // loop_exit
                _
            $region84: #{tpu_custom_call.1} parent=68 // pred_fallthru
              _
          $region69: #{tpu_custom_call.1} parent=32 // pred_fallthru
            _
          // Predicated region
          $region70: #{tpu_custom_call.1} parent=32 // pred_check
            %p200 = pneg %p196
          $region71: #{tpu_custom_call.1} parent=32 // pred_check_branch
            %202 = sbr.rel (%p200) target = $region73
          $region72: #{tpu_custom_call.1} parent=32 // pred_region
            %s203 = sshllo.u32 0, 1
            loop: start=0, step=1, limit=1
            $region74: #{tpu_custom_call.1} parent=72 // loop_pre_header
              _
            $region75: #{tpu_custom_call.1} parent=72 // loop_header
              %s205 = sphi 0, %s209
              %p206 = scmp.ge.s32.totalorder %s205, 1
              %s210 = sphi %s192, %s192
              %s211 = sphi %s193, %s193
            $region76: #{tpu_custom_call.1} parent=72 // loop_header_branch
              %208 = sbr.rel (%p206) target = $region80
            $region77: #{tpu_custom_call.1} parent=72 // loop_body
              %v212 = vld [vmem:[%s210] sm:%s203]
              %213 = vst [vmem:[%s211] sm:%s203] %v212
            $region78: #{tpu_custom_call.1} parent=72 // loop_footer
              %s209 = sadd.s32 1, %s205
            $region79: #{tpu_custom_call.1} parent=72 // loop_footer_branch
              %204 = sbr.rel target = $region75
            $region80: #{tpu_custom_call.1} parent=72 // loop_exit
              _
          $region73: #{tpu_custom_call.1} parent=32 // pred_fallthru
            _
          // Predicated region
          $region92: #{tpu_custom_call.1} parent=32 // pred_check
            _
          $region93: #{tpu_custom_call.1} parent=32 // pred_check_branch
            %237 = sbr.rel (0) target = $region95
          $region94: #{tpu_custom_call.1} parent=32 // pred_region
            %238 = vsyncadd %s194, 16
          $region95: #{tpu_custom_call.1} parent=32 // pred_fallthru
            _
        $region33: #{tpu_custom_call.1} parent=27 // loop_footer
          %s142 = sadd.s32 1, %s138
        $region34: #{tpu_custom_call.1} parent=27 // loop_footer_branch
          %137 = sbr.rel target = $region30
        $region35: #{tpu_custom_call.1} parent=27 // loop_exit
          _
        loop: start=0, step=1, limit=8
        $region96: #{tpu_custom_call.1} parent=27 // loop_pre_header
          _
        $region97: #{tpu_custom_call.1} parent=27 // loop_header
          %s240 = sphi 0, %s244
          %p241 = scmp.ge.s32.totalorder %s240, 8
        $region98: #{tpu_custom_call.1} parent=27 // loop_header_branch
          %243 = sbr.rel (%p241) target = $region102
        $region99: #{tpu_custom_call.1} parent=27 // loop_body
          %s245 = smul.u32 1, 1
          %s246 = sshll.u32 %s245, 4
          %247 = dma.done [#allocation4], %s246
          %s248 = scalar_lea.sflag [#allocation4], 1
          %s249 = sshll.u32 %s245, 4
          %250 = dma.done %s248, %s249
        $region100: #{tpu_custom_call.1} parent=27 // loop_footer
          %s244 = sadd.s32 1, %s240
        $region101: #{tpu_custom_call.1} parent=27 // loop_footer_branch
          %239 = sbr.rel target = $region97
        $region102: #{tpu_custom_call.1} parent=27 // loop_exit
          _
        %v251 = vld [vmem:[#allocation2] sm:$0xff]
        %v252 = vld [vmem:[#allocation3] sm:$0xff]
        %vm253 = vcmask 261120
        %v254 = vsel %vm253, %v251, 0.0
        %255 = vadd.xlane.f32.xlu0 %v254
        %v256 = vpop.xlane.xlu0 %255
        %vm257 = vcmask 130048
        %v258 = vsel %vm257, %v252, 0.0
        %259 = vadd.xlane.f32.xlu0 %v258
        %v260 = vpop.xlane.xlu0 %259
        %v261 = vadd.f32 %v256, %v260
        %v262 = vmul.f32 %v261, 0.020833334
        %v263 = vsub.f32 %v251, %v262
        %v264 = vsub.f32 %v252, %v262
        %v265 = vmul.f32 %v263, %v263
        %v266 = vsel %vm253, %v265, 0.0
        %267 = vadd.xlane.f32.xlu0 %v266
        %v268 = vpop.xlane.xlu0 %267
        %v269 = vmul.f32 %v264, %v264
        %v270 = vsel %vm257, %v269, 0.0
        %271 = vadd.xlane.f32.xlu0 %v270
        %v272 = vpop.xlane.xlu0 %271
        %v273 = vadd.f32 %v268, %v272
        %v274 = vmul.f32 %v273, 0.020833334
        %v275 = vadd.f32 %v274, 1e-12
        %v276 = vrsqrt.pop %v275
        %v277 = vmul.f32 %v263, %v276
        %v278 = vld [vmem:[%s4] sm:$0x1]
        %v280 = vlaneseq
        %v281 = vshrl.u32 %v280, 7
        %v282 = vsub.s32 0, %v281
        %v283 = vrot.slane %v278, %v282
        %v285 = vmul.f32 %v277, %v283
        %v286 = vld [vmem:[%s5] sm:$0x1]
        %v288 = vlaneseq
        %v289 = vshrl.u32 %v288, 7
        %v290 = vsub.s32 0, %v289
        %v291 = vrot.slane %v286, %v290
        %v293 = vadd.f32 %v285, %v291
        %294 = vst.msk [vmem:[%s135] sm:$0xff] %vm253, %v293
        %v295 = vmul.f32 %v264, %v276
        %v296 = vld [vmem:[%s4] sm:$0x1]
        %v298 = vlaneseq
        %v299 = vshrl.u32 %v298, 7
        %v300 = vsub.s32 0, %v299
        %v301 = vrot.slane %v296, %v300
        %302 = vrot.lane.b32.xlu0 %v301, 96
        %v303 = vpop.permute.xlu0 %302
        %v305 = vmul.f32 %v295, %v303
        %v306 = vld [vmem:[%s5] sm:$0x1]
        %v308 = vlaneseq
        %v309 = vshrl.u32 %v308, 7
        %v310 = vsub.s32 0, %v309
        %v311 = vrot.slane %v306, %v310
        %312 = vrot.lane.b32.xlu0 %v311, 96
        %v313 = vpop.permute.xlu0 %312
        %v315 = vadd.f32 %v305, %v313
        %317 = vrot.lane.b32.xlu0 %v315, 32
        %v318 = vpop.permute.xlu0 %317
        %vm320 = vcmask 392448
        %321 = vst.msk [vmem:[%s135] sm:$0xff] %vm320, %v318
        %s322 = sand.u32 %s80, 1
        %s323 = scalar_lea.sflag [#allocation9], %s322
        %s324 = sand.u32 %s80, 1
        %s325 = smul.addr %s324, 8
        %s326 = scalar_lea.vmem [#allocation8], %s325
        // Predicated region
        $region103: #{tpu_custom_call.1} parent=27 // pred_check
          %p327 = pneg %p90
        $region104: #{tpu_custom_call.1} parent=27 // pred_check_branch
          %329 = sbr.rel (%p327) target = $region106
        $region105: #{tpu_custom_call.1} parent=27 // pred_region
          %s331 = ssub.s32 128, 128
          %332 = vsyncadd %s323, %s331
          %s333 = smul.addr %s30, 128
          %s334 = scalar_lea.hbm %s6, %s333
          %s336 = sshll.u32 %s326, 4
          %s337 = int_to_ptr.vmem [resolvable:$true] %s336
          %339 = dma.vmem_to_hbm [thread:$0]  %s337, 128, %s334, %s323
        $region106: #{tpu_custom_call.1} parent=27 // pred_fallthru
          _
      $region28: #{tpu_custom_call.1} parent=5 // pred_fallthru
        _
      %p340 = scmp.le.s32.totalorder 2, %s25
      // Predicated region
      $region107: #{tpu_custom_call.1} parent=5 // pred_check
        %p341 = pneg %p340
      $region108: #{tpu_custom_call.1} parent=5 // pred_check_branch
        %343 = sbr.rel (%p341) target = $region110
      $region109: #{tpu_custom_call.1} parent=5 // pred_region
        %s344 = ssub.s32 %s25, 2
        // Predicated region
        $region111: #{tpu_custom_call.1} parent=109 // pred_check
          %p345 = pneg %p96
        $region112: #{tpu_custom_call.1} parent=109 // pred_check_branch
          %347 = sbr.rel (%p345) target = $region114
        $region113: #{tpu_custom_call.1} parent=109 // pred_region
          %s348 = sand.u32 %s81, 1
          %s349 = scalar_lea.sflag [#allocation9], %s348
          %s350 = sand.u32 %s81, 1
          %s351 = smul.addr %s350, 8
          %s352 = scalar_lea.vmem [#allocation8], %s351
          %353 = dma.done %s349, 128
        $region114: #{tpu_custom_call.1} parent=109 // pred_fallthru
          _
      $region110: #{tpu_custom_call.1} parent=5 // pred_fallthru
        _
    $region6: #{tpu_custom_call.1} parent=1 // loop_footer
      %s29 = sadd.s32 1, %s25
    $region7: #{tpu_custom_call.1} parent=1 // loop_footer_branch
      %24 = sbr.rel target = $region3
    $region8: #{tpu_custom_call.1} parent=1 // loop_exit
      _
    %354 = vsyncpa [#allocation9], 1
    %s355 = scalar_lea.sflag [#allocation9], 1
    %356 = vsyncpa %s355, 1
  %357 = vsyncmov [#allocation4]
  %s358 = vpop.sfrf %357
  %p359 = scmp.eq.s32.totalorder %s358, 0
  %p360 = pneg %p359
  %362 = shalt.err (%p360)
  %s363 = scalar_lea.sflag [#allocation4], 1
  %364 = vsyncmov %s363
  %s365 = vpop.sfrf %364
  %p366 = scmp.eq.s32.totalorder %s365, 0
  %p367 = pneg %p366
  %369 = shalt.err (%p367)

</llo_original>
